<compile_context>
chip_gen: v7x
topology: tpu7x:2x2x1
jax: 0.10.0
libtpu: 0.0.40
codegen_flags: <defaults>
</compile_context>

<pallas_src>
import math

import jax
import jax.numpy as jnp
from jax.experimental import pallas as pl
from jax.experimental.pallas import tpu as pltpu


# ----------------------------- Pallas kernel --------------------------------
def mlp_kernel(x_ref, w1_ref, b1_ref, w2_ref, b2_ref, w3_ref, b3_ref, o_ref):
    """Fused 3-layer MLP: Linear+ReLU -> Linear+ReLU -> Linear (bf16 MXU, f32 acc)."""
    x = x_ref[...]
    h = jnp.dot(x, w1_ref[...], preferred_element_type=jnp.float32) + b1_ref[...]
    h = jnp.maximum(h, 0.0).astype(w2_ref.dtype)
    h = jnp.dot(h, w2_ref[...], preferred_element_type=jnp.float32) + b2_ref[...]
    h = jnp.maximum(h, 0.0).astype(w3_ref.dtype)
    o = jnp.dot(h, w3_ref[...], preferred_element_type=jnp.float32) + b3_ref[...]
    o_ref[...] = o.astype(o_ref.dtype)


def siamese_forward(x, params, *, tm=128, compute_dtype=jnp.bfloat16):
    """SiameseNet.forward (classifier MLP) as a single batch-tiled Pallas call."""
    (w1, b1), (w2, b2), (w3, b3) = params
    B, d_in = x.shape
    h1 = w1.shape[1]
    h2 = w2.shape[1]
    d_out = w3.shape[1]

    # --- lane-dense final layer: pad output columns to a multiple of 128 -----
    d_out_pad = max(128, pl.cdiv(d_out, 128) * 128)
    w3p = jnp.zeros((h2, d_out_pad), w3.dtype).at[:, :d_out].set(w3)
    b3p = jnp.zeros((1, d_out_pad), b3.dtype).at[:, :d_out].set(b3)

    # --- pad batch to a multiple of the batch tile ----------------------------
    B_pad = pl.cdiv(B, tm) * tm
    xp = x if B_pad == B else jnp.zeros((B_pad, d_in), x.dtype).at[:B].set(x)

    # --- bf16 operands on the MXU, f32 accumulate -----------------------------
    xp = xp.astype(compute_dtype)
    w1c = w1.astype(compute_dtype)
    w2c = w2.astype(compute_dtype)
    w3c = w3p.astype(compute_dtype)

    grid = (B_pad // tm,)

    def resident(a):
        # full-array block, same block index at every grid step -> loaded once.
        return pl.BlockSpec(a.shape, lambda i: (0,) * a.ndim)

    flops = 2 * B_pad * (d_in * h1 + h1 * h2 + h2 * d_out_pad)
    bytes_accessed = int(
        xp.size * xp.dtype.itemsize
        + sum(a.size * a.dtype.itemsize for a in (w1c, b1, w2c, b2, w3c, b3p))
        + B_pad * d_out_pad * 4
    )

    out = pl.pallas_call(
        mlp_kernel,
        out_shape=jax.ShapeDtypeStruct((B_pad, d_out_pad), jnp.float32),
        grid=grid,
        in_specs=[
            pl.BlockSpec((tm, d_in), lambda i: (i, 0)),   # x: streamed per tile
            resident(w1c), resident(b1),
            resident(w2c), resident(b2),
            resident(w3c), resident(b3p),
        ],
        out_specs=pl.BlockSpec((tm, d_out_pad), lambda i: (i, 0)),
        compiler_params=pltpu.CompilerParams(
            dimension_semantics=("parallel",),            # 2 TCs on v7x
            vmem_limit_bytes=32 * 1024 * 1024,
        ),
        cost_estimate=pl.CostEstimate(
            flops=flops, transcendentals=0, bytes_accessed=bytes_accessed
        ),
    )(xp, w1c, b1, w2c, b2, w3c, b3p)

    return out[:B, :d_out]


# --------------------------- parameter init ---------------------------------
def xavier_normal_t(key, fan_in, fan_out, gain):
    """xavier_normal_ on a PyTorch (out,in) weight, returned transposed (in,out)."""
    std = gain * math.sqrt(2.0 / (fan_in + fan_out))
    return std * jax.random.normal(key, (fan_in, fan_out), dtype=jnp.float32)


def init_params(key, cfg_clf):
    gain = math.sqrt(2.0)  # nn.init.calculate_gain('relu')
    params = []
    dims = list(zip(cfg_clf[:-1], cfg_clf[1:]))
    keys = jax.random.split(key, len(dims))
    for k, (d_in, d_out) in zip(keys, dims):
        w = xavier_normal_t(k, d_in, d_out, gain)
        b = jnp.zeros((1, d_out), dtype=jnp.float32)  # zero bias, 2-D for TPU
        params.append((w, b))
    return params


# Pure-JAX reference (same bf16-operand / f32-accumulate recipe as the kernel).
def ref_forward(x, params, compute_dtype=jnp.bfloat16):
    (w1, b1), (w2, b2), (w3, b3) = params
    x = x.astype(compute_dtype)
    h = jnp.dot(x, w1.astype(compute_dtype), preferred_element_type=jnp.float32) + b1
    h = jnp.maximum(h, 0.0).astype(compute_dtype)
    h = jnp.dot(h, w2.astype(compute_dtype), preferred_element_type=jnp.float32) + b2
    h = jnp.maximum(h, 0.0).astype(compute_dtype)
    return jnp.dot(h, w3.astype(compute_dtype), preferred_element_type=jnp.float32) + b3


if __name__ == "__main__":
    # cfg_clf: [input_dim, hidden, hidden, output_dim]; D_agent only rescales the
    # config inside cfg_Block, so it is folded into cfg_clf here.
    cfg_clf = [32, 64, 64, 4]
    batch = 200  # not a multiple of the 128-row tile -> exercises the pad/slice path

    key = jax.random.PRNGKey(0)
    k_x, k_p = jax.random.split(key)
    x = jax.random.normal(k_x, (batch, cfg_clf[0]), dtype=jnp.float32)
    params = init_params(k_p, cfg_clf)

    out = siamese_forward(x, params)
    out = jax.block_until_ready(out)

    ref = ref_forward(x, params)
    assert out.shape == (batch, cfg_clf[-1])
    assert jnp.allclose(out, ref, atol=1e-2, rtol=1e-2), "mismatch vs JAX reference"

    print("KERNEL_OK")
</pallas_src>

<mosaic_0001>
module attributes {stable_mosaic.version = 11 : i64} {
  func.func @mlp_kernel(%arg0: i32, %arg1: memref<128x32xbf16, #tpu.memory_space<vmem>>, %arg2: memref<32x64xbf16, #tpu.memory_space<vmem>>, %arg3: memref<1x64xf32, #tpu.memory_space<vmem>>, %arg4: memref<64x64xbf16, #tpu.memory_space<vmem>>, %arg5: memref<1x64xf32, #tpu.memory_space<vmem>>, %arg6: memref<64x128xbf16, #tpu.memory_space<vmem>>, %arg7: memref<1x128xf32, #tpu.memory_space<vmem>>, %arg8: memref<128x128xf32, #tpu.memory_space<vmem>>) attributes {dimension_semantics = [#tpu.dimension_semantics<parallel>], iteration_bounds = array<i64: 2>, scalar_prefetch = 0 : i64, scratch_operands = 0 : i64, tpu.core_type = #tpu.core_type<tc>, window_params = [{transform_indices = @transform_0, window_bounds = array<i64: 128, 32>}, {pipeline_mode = #tpu.pipeline_mode<synchronous>, transform_indices = @transform_1, window_bounds = array<i64: 32, 64>}, {pipeline_mode = #tpu.pipeline_mode<synchronous>, transform_indices = @transform_2, window_bounds = array<i64: 1, 64>}, {pipeline_mode = #tpu.pipeline_mode<synchronous>, transform_indices = @transform_3, window_bounds = array<i64: 64, 64>}, {pipeline_mode = #tpu.pipeline_mode<synchronous>, transform_indices = @transform_4, window_bounds = array<i64: 1, 64>}, {pipeline_mode = #tpu.pipeline_mode<synchronous>, transform_indices = @transform_5, window_bounds = array<i64: 64, 128>}, {pipeline_mode = #tpu.pipeline_mode<synchronous>, transform_indices = @transform_6, window_bounds = array<i64: 1, 128>}, {transform_indices = @transform_7, window_bounds = array<i64: 128, 128>}]} {
    %c0 = arith.constant 0 : index
    %c0_0 = arith.constant 0 : index
    %0 = vector.load %arg1[%c0, %c0_0] : memref<128x32xbf16, #tpu.memory_space<vmem>>, vector<128x32xbf16>
    %c0_1 = arith.constant 0 : index
    %c0_2 = arith.constant 0 : index
    %1 = vector.load %arg2[%c0_1, %c0_2] : memref<32x64xbf16, #tpu.memory_space<vmem>>, vector<32x64xbf16>
    %cst = arith.constant dense<0.000000e+00> : vector<128x64xf32>
    %2 = tpu.matmul %0, %1, %cst {dimension_numbers = #tpu.dot_dimension_numbers<[1], [0], [0], [1], [0, 0, 1, 1], [], []>} : vector<128x32xbf16>, vector<32x64xbf16>, vector<128x64xf32> -> vector<128x64xf32>
    %c0_3 = arith.constant 0 : index
    %c0_4 = arith.constant 0 : index
    %3 = vector.load %arg3[%c0_3, %c0_4] : memref<1x64xf32, #tpu.memory_space<vmem>>, vector<1x64xf32>
    %4 = vector.broadcast %3 : vector<1x64xf32> to vector<128x64xf32>
    %5 = arith.addf %2, %4 : vector<128x64xf32>
    %cst_5 = arith.constant 0.000000e+00 : f32
    %6 = vector.broadcast %cst_5 : f32 to vector<128x64xf32>
    %7 = arith.maximumf %5, %6 : vector<128x64xf32>
    %8 = arith.truncf %7 : vector<128x64xf32> to vector<128x64xbf16>
    %c0_6 = arith.constant 0 : index
    %c0_7 = arith.constant 0 : index
    %9 = vector.load %arg4[%c0_6, %c0_7] : memref<64x64xbf16, #tpu.memory_space<vmem>>, vector<64x64xbf16>
    %cst_8 = arith.constant dense<0.000000e+00> : vector<128x64xf32>
    %10 = tpu.matmul %8, %9, %cst_8 {dimension_numbers = #tpu.dot_dimension_numbers<[1], [0], [0], [1], [0, 0, 1, 1], [], []>} : vector<128x64xbf16>, vector<64x64xbf16>, vector<128x64xf32> -> vector<128x64xf32>
    %c0_9 = arith.constant 0 : index
    %c0_10 = arith.constant 0 : index
    %11 = vector.load %arg5[%c0_9, %c0_10] : memref<1x64xf32, #tpu.memory_space<vmem>>, vector<1x64xf32>
    %12 = vector.broadcast %11 : vector<1x64xf32> to vector<128x64xf32>
    %13 = arith.addf %10, %12 : vector<128x64xf32>
    %cst_11 = arith.constant 0.000000e+00 : f32
    %14 = vector.broadcast %cst_11 : f32 to vector<128x64xf32>
    %15 = arith.maximumf %13, %14 : vector<128x64xf32>
    %16 = arith.truncf %15 : vector<128x64xf32> to vector<128x64xbf16>
    %c0_12 = arith.constant 0 : index
    %c0_13 = arith.constant 0 : index
    %17 = vector.load %arg6[%c0_12, %c0_13] : memref<64x128xbf16, #tpu.memory_space<vmem>>, vector<64x128xbf16>
    %cst_14 = arith.constant dense<0.000000e+00> : vector<128x128xf32>
    %18 = tpu.matmul %16, %17, %cst_14 {dimension_numbers = #tpu.dot_dimension_numbers<[1], [0], [0], [1], [0, 0, 1, 1], [], []>} : vector<128x64xbf16>, vector<64x128xbf16>, vector<128x128xf32> -> vector<128x128xf32>
    %c0_15 = arith.constant 0 : index
    %c0_16 = arith.constant 0 : index
    %19 = vector.load %arg7[%c0_15, %c0_16] : memref<1x128xf32, #tpu.memory_space<vmem>>, vector<1x128xf32>
    %20 = vector.broadcast %19 : vector<1x128xf32> to vector<128x128xf32>
    %21 = arith.addf %18, %20 : vector<128x128xf32>
    %c0_17 = arith.constant 0 : index
    %c0_18 = arith.constant 0 : index
    %22 = vector.load %arg8[%c0_17, %c0_18] : memref<128x128xf32, #tpu.memory_space<vmem>>, vector<128x128xf32>
    tpu.vector_store %arg8[%c0_17, %c0_18], %21 {strides = array<i32>} : memref<128x128xf32, #tpu.memory_space<vmem>>, vector<128x128xf32>,
    return
  }
  func.func @transform_0(%arg0: i32) -> (i32, i32) {
    %c0_i32 = arith.constant 0 : i32
    %c0_i32_0 = arith.constant 0 : i32
    return %arg0, %c0_i32 : i32, i32
  }
  func.func @transform_1(%arg0: i32) -> (i32, i32) {
    %c0_i32 = arith.constant 0 : i32
    %c0_i32_0 = arith.constant 0 : i32
    %c0_i32_1 = arith.constant 0 : i32
    return %c0_i32, %c0_i32_0 : i32, i32
  }
  func.func @transform_2(%arg0: i32) -> (i32, i32) {
    %c0_i32 = arith.constant 0 : i32
    %c0_i32_0 = arith.constant 0 : i32
    %c0_i32_1 = arith.constant 0 : i32
    return %c0_i32, %c0_i32_0 : i32, i32
  }
  func.func @transform_3(%arg0: i32) -> (i32, i32) {
    %c0_i32 = arith.constant 0 : i32
    %c0_i32_0 = arith.constant 0 : i32
    %c0_i32_1 = arith.constant 0 : i32
    return %c0_i32, %c0_i32_0 : i32, i32
  }
  func.func @transform_4(%arg0: i32) -> (i32, i32) {
    %c0_i32 = arith.constant 0 : i32
    %c0_i32_0 = arith.constant 0 : i32
    %c0_i32_1 = arith.constant 0 : i32
    return %c0_i32, %c0_i32_0 : i32, i32
  }
  func.func @transform_5(%arg0: i32) -> (i32, i32) {
    %c0_i32 = arith.constant 0 : i32
    %c0_i32_0 = arith.constant 0 : i32
    %c0_i32_1 = arith.constant 0 : i32
    return %c0_i32, %c0_i32_0 : i32, i32
  }
  func.func @transform_6(%arg0: i32) -> (i32, i32) {
    %c0_i32 = arith.constant 0 : i32
    %c0_i32_0 = arith.constant 0 : i32
    %c0_i32_1 = arith.constant 0 : i32
    return %c0_i32, %c0_i32_0 : i32, i32
  }
  func.func @transform_7(%arg0: i32) -> (i32, i32) {
    %c0_i32 = arith.constant 0 : i32
    %c0_i32_0 = arith.constant 0 : i32
    return %arg0, %c0_i32 : i32, i32
  }
}

</mosaic_0001>

<llo_original>
// kernel: tpu_custom_call.1
$region0: #{tpu_custom_call.1}
  #allocation0 [shape = 'u32[]', space=smem, size = 0x4, offset = 0x4, fixed_abs, tag = 'smem constant byte address 0x4 - core index']
  #allocation1 [shape = 'u32[144,128]{1,0:T(1,128)}', space=vmem, size = 0x12000, scoped, tag = 'internal scratch']
  %s0 = inlined_call_operand.vmem [shape: bf16[256,32], index: 0, kind: input, shape index: {}]
  %s1 = inlined_call_operand.vmem [shape: bf16[32,64], index: 1, kind: input, shape index: {}]
  %s2 = inlined_call_operand.vmem [shape: f32[1,64], index: 2, kind: input, shape index: {}]
  %s3 = inlined_call_operand.vmem [shape: bf16[64,64], index: 3, kind: input, shape index: {}]
  %s4 = inlined_call_operand.vmem [shape: f32[1,64], index: 4, kind: input, shape index: {}]
  %s5 = inlined_call_operand.vmem [shape: bf16[64,128], index: 5, kind: input, shape index: {}]
  %s6 = inlined_call_operand.vmem [shape: f32[1,128], index: 6, kind: input, shape index: {}]
  %s7 = inlined_call_operand.hbm [shape: f32[256,128], index: 7, kind: output, shape index: {}]
  %s8 = sld [smem:[#allocation0]]
  $region61: #{tpu_custom_call.1} parent=0
    _
  %s10 = ssub.s32 1, %s8
  %s11 = scalar_select 0, %s10, %s8
  $region1: #{tpu_custom_call.1} parent=0
    #allocation2 [shape = 'u8[131072]{0}', space=vmem, size = 0x20000, scoped, tag = 'output window, operand 0']
    #allocation3 [shape = 's32[2]{0}', space=sflag, size = 0x8, scoped, tag = 'scoped memory for tpu_custom_call.1']
    %12 = vsyncpa [#allocation3], 0
    %s13 = scalar_lea.sflag [#allocation3], 1
    %14 = vsyncpa %s13, 0
    loop: start=0, step=1, limit=4
    $region2: #{tpu_custom_call.1} parent=1 // loop_pre_header
      _
    $region3: #{tpu_custom_call.1} parent=1 // loop_header
      %s16 = sphi 0, %s20
      %p17 = scmp.ge.s32.totalorder %s16, 4
      %s26 = sphi 0, %s28
      %s29 = sphi 0, %s26
      %s30 = sphi 0, %s29
      %s46 = sphi 0, %s30
      %s50 = sphi 0, %s50
      %s52 = sphi 0, %s50
      %s53 = sphi 0, %s52
      %s67 = sphi 0, %s53
      %s71 = sphi 0, %s71
      %s73 = sphi 0, %s71
      %s74 = sphi 0, %s73
      %s88 = sphi 0, %s74
      %s92 = sphi 0, %s92
      %s94 = sphi 0, %s92
      %s95 = sphi 0, %s94
      %s109 = sphi 0, %s95
      %s113 = sphi 0, %s113
      %s115 = sphi 0, %s113
      %s116 = sphi 0, %s115
      %s130 = sphi 0, %s116
      %s134 = sphi 0, %s134
      %s136 = sphi 0, %s134
      %s137 = sphi 0, %s136
      %s151 = sphi 0, %s137
      %s155 = sphi 0, %s155
      %s157 = sphi 0, %s155
      %s158 = sphi 0, %s157
      %s172 = sphi 0, %s158
      %s178 = sphi 0, %s180
      %s181 = sphi 0, %s178
      %s182 = sphi 0, %s181
      %s198 = sphi 0, %s182
    $region4: #{tpu_custom_call.1} parent=1 // loop_header_branch
      %19 = sbr.rel (%p17) target = $region8
    $region5: #{tpu_custom_call.1} parent=1 // loop_body
      %s21 = ssub.s32 %s16, 1
      %s22 = ssub.s32 %s16, 2
      %s23 = sadd.s32 %s16, 1
      %s24 = ssub.s32 %s16, %s23
      %p25 = scmp.eq.s32.totalorder %s24, 0
      %s27 = sadd.s32 %s26, 1
      %s28 = scalar_select %p25, %s26, %s27
      %p31 = pneg %p25
      %p32 = scmp.eq.s32.totalorder %s16, 1
      %p33 = por %p31, %p32
      %p34 = scmp.ne.s32.totalorder %s26, %s29
      %p35 = scmp.eq.s32.totalorder %s16, 0
      %p36 = por %p34, %p35
      %p37 = scmp.ne.s32.totalorder %s26, %s29
      %p38 = scmp.eq.s32.totalorder %s21, 1
      %p39 = por %p37, %p38
      %p40 = scmp.ne.s32.totalorder %s29, %s30
      %p41 = scmp.eq.s32.totalorder %s21, 0
      %p42 = por %p40, %p41
      %p43 = scmp.ne.s32.totalorder %s29, %s30
      %p44 = scmp.eq.s32.totalorder %s22, 1
      %p45 = por %p43, %p44
      %p47 = scmp.ne.s32.totalorder %s30, %s46
      %p48 = scmp.eq.s32.totalorder %s22, 0
      %p49 = por %p47, %p48
      %s51 = sadd.s32 %s50, 1
      %p54 = scmp.eq.s32.totalorder %s16, 1
      %p55 = scmp.ne.s32.totalorder %s50, %s52
      %p56 = scmp.eq.s32.totalorder %s16, 0
      %p57 = por %p55, %p56
      %p58 = scmp.ne.s32.totalorder %s50, %s52
      %p59 = scmp.eq.s32.totalorder %s21, 1
      %p60 = por %p58, %p59
      %p61 = scmp.ne.s32.totalorder %s52, %s53
      %p62 = scmp.eq.s32.totalorder %s21, 0
      %p63 = por %p61, %p62
      %p64 = scmp.ne.s32.totalorder %s52, %s53
      %p65 = scmp.eq.s32.totalorder %s22, 1
      %p66 = por %p64, %p65
      %p68 = scmp.ne.s32.totalorder %s53, %s67
      %p69 = scmp.eq.s32.totalorder %s22, 0
      %p70 = por %p68, %p69
      %s72 = sadd.s32 %s71, 1
      %p75 = scmp.eq.s32.totalorder %s16, 1
      %p76 = scmp.ne.s32.totalorder %s71, %s73
      %p77 = scmp.eq.s32.totalorder %s16, 0
      %p78 = por %p76, %p77
      %p79 = scmp.ne.s32.totalorder %s71, %s73
      %p80 = scmp.eq.s32.totalorder %s21, 1
      %p81 = por %p79, %p80
      %p82 = scmp.ne.s32.totalorder %s73, %s74
      %p83 = scmp.eq.s32.totalorder %s21, 0
      %p84 = por %p82, %p83
      %p85 = scmp.ne.s32.totalorder %s73, %s74
      %p86 = scmp.eq.s32.totalorder %s22, 1
      %p87 = por %p85, %p86
      %p89 = scmp.ne.s32.totalorder %s74, %s88
      %p90 = scmp.eq.s32.totalorder %s22, 0
      %p91 = por %p89, %p90
      %s93 = sadd.s32 %s92, 1
      %p96 = scmp.eq.s32.totalorder %s16, 1
      %p97 = scmp.ne.s32.totalorder %s92, %s94
      %p98 = scmp.eq.s32.totalorder %s16, 0
      %p99 = por %p97, %p98
      %p100 = scmp.ne.s32.totalorder %s92, %s94
      %p101 = scmp.eq.s32.totalorder %s21, 1
      %p102 = por %p100, %p101
      %p103 = scmp.ne.s32.totalorder %s94, %s95
      %p104 = scmp.eq.s32.totalorder %s21, 0
      %p105 = por %p103, %p104
      %p106 = scmp.ne.s32.totalorder %s94, %s95
      %p107 = scmp.eq.s32.totalorder %s22, 1
      %p108 = por %p106, %p107
      %p110 = scmp.ne.s32.totalorder %s95, %s109
      %p111 = scmp.eq.s32.totalorder %s22, 0
      %p112 = por %p110, %p111
      %s114 = sadd.s32 %s113, 1
      %p117 = scmp.eq.s32.totalorder %s16, 1
      %p118 = scmp.ne.s32.totalorder %s113, %s115
      %p119 = scmp.eq.s32.totalorder %s16, 0
      %p120 = por %p118, %p119
      %p121 = scmp.ne.s32.totalorder %s113, %s115
      %p122 = scmp.eq.s32.totalorder %s21, 1
      %p123 = por %p121, %p122
      %p124 = scmp.ne.s32.totalorder %s115, %s116
      %p125 = scmp.eq.s32.totalorder %s21, 0
      %p126 = por %p124, %p125
      %p127 = scmp.ne.s32.totalorder %s115, %s116
      %p128 = scmp.eq.s32.totalorder %s22, 1
      %p129 = por %p127, %p128
      %p131 = scmp.ne.s32.totalorder %s116, %s130
      %p132 = scmp.eq.s32.totalorder %s22, 0
      %p133 = por %p131, %p132
      %s135 = sadd.s32 %s134, 1
      %p138 = scmp.eq.s32.totalorder %s16, 1
      %p139 = scmp.ne.s32.totalorder %s134, %s136
      %p140 = scmp.eq.s32.totalorder %s16, 0
      %p141 = por %p139, %p140
      %p142 = scmp.ne.s32.totalorder %s134, %s136
      %p143 = scmp.eq.s32.totalorder %s21, 1
      %p144 = por %p142, %p143
      %p145 = scmp.ne.s32.totalorder %s136, %s137
      %p146 = scmp.eq.s32.totalorder %s21, 0
      %p147 = por %p145, %p146
      %p148 = scmp.ne.s32.totalorder %s136, %s137
      %p149 = scmp.eq.s32.totalorder %s22, 1
      %p150 = por %p148, %p149
      %p152 = scmp.ne.s32.totalorder %s137, %s151
      %p153 = scmp.eq.s32.totalorder %s22, 0
      %p154 = por %p152, %p153
      %s156 = sadd.s32 %s155, 1
      %p159 = scmp.eq.s32.totalorder %s16, 1
      %p160 = scmp.ne.s32.totalorder %s155, %s157
      %p161 = scmp.eq.s32.totalorder %s16, 0
      %p162 = por %p160, %p161
      %p163 = scmp.ne.s32.totalorder %s155, %s157
      %p164 = scmp.eq.s32.totalorder %s21, 1
      %p165 = por %p163, %p164
      %p166 = scmp.ne.s32.totalorder %s157, %s158
      %p167 = scmp.eq.s32.totalorder %s21, 0
      %p168 = por %p166, %p167
      %p169 = scmp.ne.s32.totalorder %s157, %s158
      %p170 = scmp.eq.s32.totalorder %s22, 1
      %p171 = por %p169, %p170
      %p173 = scmp.ne.s32.totalorder %s158, %s172
      %p174 = scmp.eq.s32.totalorder %s22, 0
      %p175 = por %p173, %p174
      %s176 = ssub.s32 %s16, %s23
      %p177 = scmp.eq.s32.totalorder %s176, 0
      %s179 = sadd.s32 %s178, 1
      %s180 = scalar_select %p177, %s178, %s179
      %p183 = pneg %p177
      %p184 = scmp.eq.s32.totalorder %s16, 1
      %p185 = por %p183, %p184
      %p186 = scmp.ne.s32.totalorder %s178, %s181
      %p187 = scmp.eq.s32.totalorder %s16, 0
      %p188 = por %p186, %p187
      %p189 = scmp.ne.s32.totalorder %s178, %s181
      %p190 = scmp.eq.s32.totalorder %s21, 1
      %p191 = por %p189, %p190
      %p192 = scmp.ne.s32.totalorder %s181, %s182
      %p193 = scmp.eq.s32.totalorder %s21, 0
      %p194 = por %p192, %p193
      %p195 = scmp.ne.s32.totalorder %s181, %s182
      %p196 = scmp.eq.s32.totalorder %s22, 1
      %p197 = por %p195, %p196
      %p199 = scmp.ne.s32.totalorder %s182, %s198
      %p200 = scmp.eq.s32.totalorder %s22, 0
      %p201 = por %p199, %p200
      %p202 = scmp.le.s32.totalorder 1, %s16
      %p203 = scmp.lt.s32.totalorder %s16, 3
      %p204 = pnand %p202, %p203
      %p205 = pneg %p204
      // Predicated region
      $region9: #{tpu_custom_call.1} parent=5 // pred_check
        _
      $region10: #{tpu_custom_call.1} parent=5 // pred_check_branch
        %207 = sbr.rel (%p204) target = $region12
      $region11: #{tpu_custom_call.1} parent=5 // pred_region
        %s208 = ssub.s32 %s16, 1
        // Predicated region
        $region13: #{tpu_custom_call.1} parent=11 // pred_check
          %p209 = pneg %p63
        $region14: #{tpu_custom_call.1} parent=11 // pred_check_branch
          %211 = sbr.rel (%p209) target = $region16
        $region15: #{tpu_custom_call.1} parent=11 // pred_region
          _
        $region16: #{tpu_custom_call.1} parent=11 // pred_fallthru
          _
        // Predicated region
        $region17: #{tpu_custom_call.1} parent=11 // pred_check
          %p212 = pneg %p84
        $region18: #{tpu_custom_call.1} parent=11 // pred_check_branch
          %214 = sbr.rel (%p212) target = $region20
        $region19: #{tpu_custom_call.1} parent=11 // pred_region
          _
        $region20: #{tpu_custom_call.1} parent=11 // pred_fallthru
          _
        // Predicated region
        $region21: #{tpu_custom_call.1} parent=11 // pred_check
          %p215 = pneg %p105
        $region22: #{tpu_custom_call.1} parent=11 // pred_check_branch
          %217 = sbr.rel (%p215) target = $region24
        $region23: #{tpu_custom_call.1} parent=11 // pred_region
          _
        $region24: #{tpu_custom_call.1} parent=11 // pred_fallthru
          _
        // Predicated region
        $region25: #{tpu_custom_call.1} parent=11 // pred_check
          %p218 = pneg %p126
        $region26: #{tpu_custom_call.1} parent=11 // pred_check_branch
          %220 = sbr.rel (%p218) target = $region28
        $region27: #{tpu_custom_call.1} parent=11 // pred_region
          _
        $region28: #{tpu_custom_call.1} parent=11 // pred_fallthru
          _
        // Predicated region
        $region29: #{tpu_custom_call.1} parent=11 // pred_check
          %p221 = pneg %p147
        $region30: #{tpu_custom_call.1} parent=11 // pred_check_branch
          %223 = sbr.rel (%p221) target = $region32
        $region31: #{tpu_custom_call.1} parent=11 // pred_region
          _
        $region32: #{tpu_custom_call.1} parent=11 // pred_fallthru
          _
        // Predicated region
        $region33: #{tpu_custom_call.1} parent=11 // pred_check
          %p224 = pneg %p168
        $region34: #{tpu_custom_call.1} parent=11 // pred_check_branch
          %226 = sbr.rel (%p224) target = $region36
        $region35: #{tpu_custom_call.1} parent=11 // pred_region
          _
        $region36: #{tpu_custom_call.1} parent=11 // pred_fallthru
          _
      $region12: #{tpu_custom_call.1} parent=5 // pred_fallthru
        _
      %p227 = scmp.lt.s32.totalorder %s16, 2
      // Predicated region
      $region37: #{tpu_custom_call.1} parent=5 // pred_check
        %p228 = pneg %p227
      $region38: #{tpu_custom_call.1} parent=5 // pred_check_branch
        %230 = sbr.rel (%p228) target = $region40
      $region39: #{tpu_custom_call.1} parent=5 // pred_region
        // Predicated region
        $region41: #{tpu_custom_call.1} parent=39 // pred_check
          %p231 = pneg %p36
        $region42: #{tpu_custom_call.1} parent=39 // pred_check_branch
          %233 = sbr.rel (%p231) target = $region44
        $region43: #{tpu_custom_call.1} parent=39 // pred_region
          %s234 = smul.u32 16, %s16
          %p235 = scmp.lt.s32.totalorder %s234, 31
          %s236 = scalar_select %p235, %s234, 31
          %s237 = smul.addr %s236, 4
          %s238 = scalar_lea.vmem %s0, %s237
          %s239 = smul.u32 16, %s16
        $region44: #{tpu_custom_call.1} parent=39 // pred_fallthru
          _
      $region40: #{tpu_custom_call.1} parent=5 // pred_fallthru
        _
      %p240 = scmp.le.s32.totalorder 1, %s16
      %p241 = scmp.lt.s32.totalorder %s16, 3
      %p242 = pnand %p240, %p241
      %p243 = pneg %p242
      // Predicated region
      $region45: #{tpu_custom_call.1} parent=5 // pred_check
        _
      $region46: #{tpu_custom_call.1} parent=5 // pred_check_branch
        %245 = sbr.rel (%p242) target = $region48
      $region47: #{tpu_custom_call.1} parent=5 // pred_region
        %s246 = ssub.s32 %s16, 1
        %s247 = smul.u32 16, %s21
        %p248 = scmp.lt.s32.totalorder %s247, 31
        %s249 = scalar_select %p248, %s247, 31
        %s250 = smul.addr %s249, 4
        %s251 = scalar_lea.vmem %s0, %s250
        %p252 = pneg %p42
        %p253 = pneg %p39
        %p254 = pneg %p63
        %p255 = pneg %p60
        %p256 = pneg %p84
        %p257 = pneg %p81
        %p258 = pneg %p105
        %p259 = pneg %p102
        %p260 = pneg %p126
        %p261 = pneg %p123
        %p262 = pneg %p147
        %p263 = pneg %p144
        %p264 = pneg %p168
        %p265 = pneg %p165
        %p266 = pneg %p194
        %p267 = pneg %p191
        %s268 = sand.u32 %s181, 1
        %s269 = scalar_lea.sflag [#allocation3], %s268
        %s270 = sand.u32 %s181, 1
        %s271 = smul.addr %s270, 128
        %s272 = scalar_lea.vmem [#allocation2], %s271
        %s273 = smul.u32 16, %s21
        %p274 = scmp.lt.s32.totalorder %s273, 31
        %s275 = scalar_select %p274, %s273, 31
        %s276 = smul.addr %s275, 4
        %s277 = scalar_lea.vmem %s0, %s276
        %s278 = smul.u32 16, %s21
        %s279 = smul.u32 16, %s21
        %v281 = vld [vmem:[%s277] sm:$0xf]
        %v282 = vld [vmem:[%s277 + $0x4] sm:$0xf]
        %v283 = vld [vmem:[%s277 + $0x8] sm:$0xf]
        %v284 = vld [vmem:[%s277 + $0xc] sm:$0xf]
        %v285 = vld [vmem:[%s277 + $0x10] sm:$0xf]
        %v286 = vld [vmem:[%s277 + $0x14] sm:$0xf]
        %v287 = vld [vmem:[%s277 + $0x18] sm:$0xf]
        %v288 = vld [vmem:[%s277 + $0x1c] sm:$0xf]
        %v289 = vld [vmem:[%s277 + $0x20] sm:$0xf]
        %v290 = vld [vmem:[%s277 + $0x24] sm:$0xf]
        %v291 = vld [vmem:[%s277 + $0x28] sm:$0xf]
        %v292 = vld [vmem:[%s277 + $0x2c] sm:$0xf]
        %v293 = vld [vmem:[%s277 + $0x30] sm:$0xf]
        %v294 = vld [vmem:[%s277 + $0x34] sm:$0xf]
        %v295 = vld [vmem:[%s277 + $0x38] sm:$0xf]
        %v296 = vld [vmem:[%s277 + $0x3c] sm:$0xf]
        %v297 = vld [vmem:[%s1] sm:$0xf]
        %v298 = vld [vmem:[%s1 + $0x4] sm:$0xf]
        %v299 = vld [vmem:[%s1 + $0x8] sm:$0xf]
        %v300 = vld [vmem:[%s1 + $0xc] sm:$0xf]
        %v301 = vld [vmem:[%s2] sm:$0x1]
        %v303 = vlaneseq
        %v304 = vshrl.u32 %v303, 7
        %v305 = vsub.s32 0, %v304
        %v306 = vrot.slane %v301, %v305
        %v324 = vunpack.c.l.b16 %v281
        %v325 = vunpack.c.l.b16 %v282
        %v326 = vunpack.c.l.b16 %v283
        %v327 = vunpack.c.l.b16 %v284
        %v328 = vunpack.c.l.b16 %v285
        %v329 = vunpack.c.l.b16 %v286
        %v330 = vunpack.c.l.b16 %v287
        %v331 = vunpack.c.l.b16 %v288
        %v332 = vunpack.c.l.b16 %v289
        %v333 = vunpack.c.l.b16 %v290
        %v334 = vunpack.c.l.b16 %v291
        %v335 = vunpack.c.l.b16 %v292
        %v336 = vunpack.c.l.b16 %v293
        %v337 = vunpack.c.l.b16 %v294
        %v338 = vunpack.c.l.b16 %v295
        %v339 = vunpack.c.l.b16 %v296
        %v340 = vpack.c.b16 %v325, %v324
        %v341 = vpack.c.b16 %v327, %v326
        %v342 = vpack.c.b16 %v329, %v328
        %v343 = vpack.c.b16 %v331, %v330
        %v344 = vpack.c.b16 %v333, %v332
        %v345 = vpack.c.b16 %v335, %v334
        %v346 = vpack.c.b16 %v337, %v336
        %v347 = vpack.c.b16 %v339, %v338
        %v352 = vunpack.c.l.b16 %v297
        %v353 = vunpack.c.l.b16 %v298
        %v354 = vunpack.c.l.b16 %v299
        %v355 = vunpack.c.l.b16 %v300
        %v356 = vpack.c.b16 %v353, %v352
        %v357 = vpack.c.b16 %v355, %v354
        %vm360 = vcmask 261120
        %v362 = vsel %vm360, %v340, 0
        %v365 = vsel %vm360, %v341, 0
        %v368 = vsel %vm360, %v342, 0
        %v371 = vsel %vm360, %v343, 0
        %v374 = vsel %vm360, %v344, 0
        %v377 = vsel %vm360, %v345, 0
        %v380 = vsel %vm360, %v346, 0
        %v383 = vsel %vm360, %v347, 0
        %385 = vmatprep.subr.bf16.mxu0 0
        %386 = vmatpush1.bf16.msra.mxu0 %v356
        %387 = vmatprep.subr.bf16.mxu0 0
        %388 = vmatpush1.bf16.msra.mxu0 %v357
        %389 = vmatprep.subr.bf16.mxu0 0
        %390 = vmatpush1.bf16.msra.mxu0 0
        %391 = vmatprep.subr.bf16.mxu0 0
        %392 = vmatpush1.bf16.msra.mxu0 0
        %393 = vmatprep.subr.bf16.mxu0 0
        %394 = vmatpush1.bf16.msra.mxu0 0
        %395 = vmatprep.subr.bf16.mxu0 0
        %396 = vmatpush1.bf16.msra.mxu0 0
        %397 = vmatprep.subr.bf16.mxu0 0
        %398 = vmatpush1.bf16.msra.mxu0 0
        %399 = vmatprep.subr.bf16.mxu0 0
        %400 = vmatpush1.bf16.msra.mxu0 0
        %401 = vmatprep.subr.bf16.mxu0 0
        %402 = vmatpush1.bf16.msra.mxu0 0
        %403 = vmatprep.subr.bf16.mxu0 0
        %404 = vmatpush1.bf16.msra.mxu0 0
        %405 = vmatprep.subr.bf16.mxu0 0
        %406 = vmatpush1.bf16.msra.mxu0 0
        %407 = vmatprep.subr.bf16.mxu0 0
        %408 = vmatpush1.bf16.msra.mxu0 0
        %409 = vmatprep.subr.bf16.mxu0 0
        %410 = vmatpush1.bf16.msra.mxu0 0
        %411 = vmatprep.subr.bf16.mxu0 0
        %412 = vmatpush1.bf16.msra.mxu0 0
        %413 = vmatprep.subr.bf16.mxu0 0
        %414 = vmatpush1.bf16.msra.mxu0 0
        %415 = vmatprep.subr.bf16.mxu0 0
        %416 = vmatpush1.bf16.msra.mxu0 0
        %417 = vmatprep.mubr.bf16.mxu0 0
        %418 = vmatmul.mubr.bf16.gmra.mrb[0].mxu0 %v362
        %v419 = vpop.f32.mrb[0].mxu0
        %v420 = vadd.f32 %v306, %v419
        %v421 = vpop.f32.mrb[0].mxu0
        %v422 = vpop.f32.mrb[0].mxu0
        %v423 = vadd.f32 %v306, %v422
        %v424 = vpop.f32.mrb[0].mxu0
        %425 = vmatprep.mubr.bf16.mxu0 0
        %426 = vmatmul.mubr.bf16.gmra.mrb[0].mxu0 %v365
        %v427 = vpop.f32.mrb[0].mxu0
        %v428 = vadd.f32 %v306, %v427
        %v429 = vpop.f32.mrb[0].mxu0
        %v430 = vpop.f32.mrb[0].mxu0
        %v431 = vadd.f32 %v306, %v430
        %v432 = vpop.f32.mrb[0].mxu0
        %433 = vmatprep.mubr.bf16.mxu0 0
        %434 = vmatmul.mubr.bf16.gmra.mrb[0].mxu0 %v368
        %v435 = vpop.f32.mrb[0].mxu0
        %v436 = vadd.f32 %v306, %v435
        %v437 = vpop.f32.mrb[0].mxu0
        %v438 = vpop.f32.mrb[0].mxu0
        %v439 = vadd.f32 %v306, %v438
        %v440 = vpop.f32.mrb[0].mxu0
        %441 = vmatprep.mubr.bf16.mxu0 0
        %442 = vmatmul.mubr.bf16.gmra.mrb[0].mxu0 %v371
        %v443 = vpop.f32.mrb[0].mxu0
        %v444 = vadd.f32 %v306, %v443
        %v445 = vpop.f32.mrb[0].mxu0
        %v446 = vpop.f32.mrb[0].mxu0
        %v447 = vadd.f32 %v306, %v446
        %v448 = vpop.f32.mrb[0].mxu0
        %449 = vmatprep.mubr.bf16.mxu0 0
        %450 = vmatmul.mubr.bf16.gmra.mrb[0].mxu0 %v374
        %v451 = vpop.f32.mrb[0].mxu0
        %v452 = vadd.f32 %v306, %v451
        %v453 = vpop.f32.mrb[0].mxu0
        %v454 = vpop.f32.mrb[0].mxu0
        %v455 = vadd.f32 %v306, %v454
        %v456 = vpop.f32.mrb[0].mxu0
        %457 = vmatprep.mubr.bf16.mxu0 0
        %458 = vmatmul.mubr.bf16.gmra.mrb[0].mxu0 %v377
        %v459 = vpop.f32.mrb[0].mxu0
        %v460 = vadd.f32 %v306, %v459
        %v461 = vpop.f32.mrb[0].mxu0
        %v462 = vpop.f32.mrb[0].mxu0
        %v463 = vadd.f32 %v306, %v462
        %v464 = vpop.f32.mrb[0].mxu0
        %465 = vmatprep.mubr.bf16.mxu0 0
        %466 = vmatmul.mubr.bf16.gmra.mrb[0].mxu0 %v380
        %v467 = vpop.f32.mrb[0].mxu0
        %v468 = vadd.f32 %v306, %v467
        %v469 = vpop.f32.mrb[0].mxu0
        %v470 = vpop.f32.mrb[0].mxu0
        %v471 = vadd.f32 %v306, %v470
        %v472 = vpop.f32.mrb[0].mxu0
        %473 = vmatprep.mubr.bf16.mxu0 0
        %474 = vmatmul.mubr.bf16.gmra.mrb[0].mxu0 %v383
        %v475 = vpop.f32.mrb[0].mxu0
        %v476 = vadd.f32 %v306, %v475
        %v477 = vpop.f32.mrb[0].mxu0
        %v478 = vpop.f32.mrb[0].mxu0
        %v479 = vadd.f32 %v306, %v478
        %v480 = vpop.f32.mrb[0].mxu0
        %481 = vdwg.mxu0
        %v482 = vmax.f32 %v420, 0.0
        %v483 = vmax.f32 %v423, 0.0
        %v484 = vmax.f32 %v428, 0.0
        %v485 = vmax.f32 %v431, 0.0
        %v486 = vmax.f32 %v436, 0.0
        %v487 = vmax.f32 %v439, 0.0
        %v488 = vmax.f32 %v444, 0.0
        %v489 = vmax.f32 %v447, 0.0
        %v490 = vmax.f32 %v452, 0.0
        %v491 = vmax.f32 %v455, 0.0
        %v492 = vmax.f32 %v460, 0.0
        %v493 = vmax.f32 %v463, 0.0
        %v494 = vmax.f32 %v468, 0.0
        %v495 = vmax.f32 %v471, 0.0
        %v496 = vmax.f32 %v476, 0.0
        %v497 = vmax.f32 %v479, 0.0
        %v498 = vpack.c.bf16 %v483, %v482
        %v499 = vpack.c.bf16 %v485, %v484
        %v500 = vpack.c.bf16 %v487, %v486
        %v501 = vpack.c.bf16 %v489, %v488
        %v502 = vpack.c.bf16 %v491, %v490
        %v503 = vpack.c.bf16 %v493, %v492
        %v504 = vpack.c.bf16 %v495, %v494
        %v505 = vpack.c.bf16 %v497, %v496
        %v506 = vld [vmem:[%s3] sm:$0xf]
        %v507 = vld [vmem:[%s3 + $0x4] sm:$0xf]
        %v508 = vld [vmem:[%s3 + $0x8] sm:$0xf]
        %v509 = vld [vmem:[%s3 + $0xc] sm:$0xf]
        %v510 = vld [vmem:[%s3 + $0x10] sm:$0xf]
        %v511 = vld [vmem:[%s3 + $0x14] sm:$0xf]
        %v512 = vld [vmem:[%s3 + $0x18] sm:$0xf]
        %v513 = vld [vmem:[%s3 + $0x1c] sm:$0xf]
        %v514 = vld [vmem:[%s4] sm:$0x1]
        %v516 = vlaneseq
        %v517 = vshrl.u32 %v516, 7
        %v518 = vsub.s32 0, %v517
        %v519 = vrot.slane %v514, %v518
        %v529 = vunpack.c.l.b16 %v506
        %v530 = vunpack.c.l.b16 %v507
        %v531 = vunpack.c.l.b16 %v508
        %v532 = vunpack.c.l.b16 %v509
        %v533 = vunpack.c.l.b16 %v510
        %v534 = vunpack.c.l.b16 %v511
        %v535 = vunpack.c.l.b16 %v512
        %v536 = vunpack.c.l.b16 %v513
        %v537 = vpack.c.b16 %v530, %v529
        %v538 = vpack.c.b16 %v532, %v531
        %v539 = vpack.c.b16 %v534, %v533
        %v540 = vpack.c.b16 %v536, %v535
        %vm545 = vcmask 523264
        %v547 = vsel %vm545, %v498, 0
        %v550 = vsel %vm545, %v499, 0
        %v553 = vsel %vm545, %v500, 0
        %v556 = vsel %vm545, %v501, 0
        %v559 = vsel %vm545, %v502, 0
        %v562 = vsel %vm545, %v503, 0
        %v565 = vsel %vm545, %v504, 0
        %v568 = vsel %vm545, %v505, 0
        %570 = vmatprep.subr.bf16.mxu0 0
        %571 = vmatpush1.bf16.msra.mxu0 %v537
        %572 = vmatprep.subr.bf16.mxu0 0
        %573 = vmatpush1.bf16.msra.mxu0 %v538
        %574 = vmatprep.subr.bf16.mxu0 0
        %575 = vmatpush1.bf16.msra.mxu0 %v539
        %576 = vmatprep.subr.bf16.mxu0 0
        %577 = vmatpush1.bf16.msra.mxu0 %v540
        %578 = vmatprep.subr.bf16.mxu0 0
        %579 = vmatpush1.bf16.msra.mxu0 0
        %580 = vmatprep.subr.bf16.mxu0 0
        %581 = vmatpush1.bf16.msra.mxu0 0
        %582 = vmatprep.subr.bf16.mxu0 0
        %583 = vmatpush1.bf16.msra.mxu0 0
        %584 = vmatprep.subr.bf16.mxu0 0
        %585 = vmatpush1.bf16.msra.mxu0 0
        %586 = vmatprep.subr.bf16.mxu0 0
        %587 = vmatpush1.bf16.msra.mxu0 0
        %588 = vmatprep.subr.bf16.mxu0 0
        %589 = vmatpush1.bf16.msra.mxu0 0
        %590 = vmatprep.subr.bf16.mxu0 0
        %591 = vmatpush1.bf16.msra.mxu0 0
        %592 = vmatprep.subr.bf16.mxu0 0
        %593 = vmatpush1.bf16.msra.mxu0 0
        %594 = vmatprep.subr.bf16.mxu0 0
        %595 = vmatpush1.bf16.msra.mxu0 0
        %596 = vmatprep.subr.bf16.mxu0 0
        %597 = vmatpush1.bf16.msra.mxu0 0
        %598 = vmatprep.subr.bf16.mxu0 0
        %599 = vmatpush1.bf16.msra.mxu0 0
        %600 = vmatprep.subr.bf16.mxu0 0
        %601 = vmatpush1.bf16.msra.mxu0 0
        %602 = vmatprep.mubr.bf16.mxu0 0
        %603 = vmatmul.mubr.bf16.gmra.mrb[0].mxu0 %v547
        %v604 = vpop.f32.mrb[0].mxu0
        %v605 = vadd.f32 %v519, %v604
        %v606 = vpop.f32.mrb[0].mxu0
        %v607 = vpop.f32.mrb[0].mxu0
        %v608 = vadd.f32 %v519, %v607
        %v609 = vpop.f32.mrb[0].mxu0
        %610 = vmatprep.mubr.bf16.mxu0 0
        %611 = vmatmul.mubr.bf16.gmra.mrb[0].mxu0 %v550
        %v612 = vpop.f32.mrb[0].mxu0
        %v613 = vadd.f32 %v519, %v612
        %v614 = vpop.f32.mrb[0].mxu0
        %v615 = vpop.f32.mrb[0].mxu0
        %v616 = vadd.f32 %v519, %v615
        %v617 = vpop.f32.mrb[0].mxu0
        %618 = vmatprep.mubr.bf16.mxu0 0
        %619 = vmatmul.mubr.bf16.gmra.mrb[0].mxu0 %v553
        %v620 = vpop.f32.mrb[0].mxu0
        %v621 = vadd.f32 %v519, %v620
        %v622 = vpop.f32.mrb[0].mxu0
        %v623 = vpop.f32.mrb[0].mxu0
        %v624 = vadd.f32 %v519, %v623
        %v625 = vpop.f32.mrb[0].mxu0
        %626 = vmatprep.mubr.bf16.mxu0 0
        %627 = vmatmul.mubr.bf16.gmra.mrb[0].mxu0 %v556
        %v628 = vpop.f32.mrb[0].mxu0
        %v629 = vadd.f32 %v519, %v628
        %v630 = vpop.f32.mrb[0].mxu0
        %v631 = vpop.f32.mrb[0].mxu0
        %v632 = vadd.f32 %v519, %v631
        %v633 = vpop.f32.mrb[0].mxu0
        %634 = vmatprep.mubr.bf16.mxu0 0
        %635 = vmatmul.mubr.bf16.gmra.mrb[0].mxu0 %v559
        %v636 = vpop.f32.mrb[0].mxu0
        %v637 = vadd.f32 %v519, %v636
        %v638 = vpop.f32.mrb[0].mxu0
        %v639 = vpop.f32.mrb[0].mxu0
        %v640 = vadd.f32 %v519, %v639
        %v641 = vpop.f32.mrb[0].mxu0
        %642 = vmatprep.mubr.bf16.mxu0 0
        %643 = vmatmul.mubr.bf16.gmra.mrb[0].mxu0 %v562
        %v644 = vpop.f32.mrb[0].mxu0
        %v645 = vadd.f32 %v519, %v644
        %v646 = vpop.f32.mrb[0].mxu0
        %v647 = vpop.f32.mrb[0].mxu0
        %v648 = vadd.f32 %v519, %v647
        %v649 = vpop.f32.mrb[0].mxu0
        %650 = vmatprep.mubr.bf16.mxu0 0
        %651 = vmatmul.mubr.bf16.gmra.mrb[0].mxu0 %v565
        %v652 = vpop.f32.mrb[0].mxu0
        %v653 = vadd.f32 %v519, %v652
        %v654 = vpop.f32.mrb[0].mxu0
        %v655 = vpop.f32.mrb[0].mxu0
        %v656 = vadd.f32 %v519, %v655
        %v657 = vpop.f32.mrb[0].mxu0
        %658 = vmatprep.mubr.bf16.mxu0 0
        %659 = vmatmul.mubr.bf16.gmra.mrb[0].mxu0 %v568
        %v660 = vpop.f32.mrb[0].mxu0
        %v661 = vadd.f32 %v519, %v660
        %v662 = vpop.f32.mrb[0].mxu0
        %v663 = vpop.f32.mrb[0].mxu0
        %v664 = vadd.f32 %v519, %v663
        %v665 = vpop.f32.mrb[0].mxu0
        %666 = vdwg.mxu0
        %v667 = vmax.f32 %v605, 0.0
        %v668 = vmax.f32 %v608, 0.0
        %v669 = vmax.f32 %v613, 0.0
        %v670 = vmax.f32 %v616, 0.0
        %v671 = vmax.f32 %v621, 0.0
        %v672 = vmax.f32 %v624, 0.0
        %v673 = vmax.f32 %v629, 0.0
        %v674 = vmax.f32 %v632, 0.0
        %v675 = vmax.f32 %v637, 0.0
        %v676 = vmax.f32 %v640, 0.0
        %v677 = vmax.f32 %v645, 0.0
        %v678 = vmax.f32 %v648, 0.0
        %v679 = vmax.f32 %v653, 0.0
        %v680 = vmax.f32 %v656, 0.0
        %v681 = vmax.f32 %v661, 0.0
        %v682 = vmax.f32 %v664, 0.0
        %v683 = vpack.c.bf16 %v668, %v667
        %v684 = vpack.c.bf16 %v670, %v669
        %v685 = vpack.c.bf16 %v672, %v671
        %v686 = vpack.c.bf16 %v674, %v673
        %v687 = vpack.c.bf16 %v676, %v675
        %v688 = vpack.c.bf16 %v678, %v677
        %v689 = vpack.c.bf16 %v680, %v679
        %v690 = vpack.c.bf16 %v682, %v681
        %v691 = vld [vmem:[%s5] sm:$0xf]
        %v692 = vld [vmem:[%s5 + $0x4] sm:$0xf]
        %v693 = vld [vmem:[%s5 + $0x8] sm:$0xf]
        %v694 = vld [vmem:[%s5 + $0xc] sm:$0xf]
        %v695 = vld [vmem:[%s5 + $0x10] sm:$0xf]
        %v696 = vld [vmem:[%s5 + $0x14] sm:$0xf]
        %v697 = vld [vmem:[%s5 + $0x18] sm:$0xf]
        %v698 = vld [vmem:[%s5 + $0x1c] sm:$0xf]
        %v699 = vld [vmem:[%s6] sm:$0x1]
        %v701 = vlaneseq
        %v702 = vshrl.u32 %v701, 7
        %v703 = vsub.s32 0, %v702
        %v704 = vrot.slane %v699, %v703
        %v714 = vunpack.c.l.b16 %v691
        %v715 = vunpack.c.l.b16 %v692
        %v716 = vunpack.c.l.b16 %v693
        %v717 = vunpack.c.l.b16 %v694
        %v718 = vunpack.c.l.b16 %v695
        %v719 = vunpack.c.l.b16 %v696
        %v720 = vunpack.c.l.b16 %v697
        %v721 = vunpack.c.l.b16 %v698
        %v722 = vpack.c.b16 %v715, %v714
        %v723 = vpack.c.b16 %v717, %v716
        %v724 = vpack.c.b16 %v719, %v718
        %v725 = vpack.c.b16 %v721, %v720
        %v731 = vsel %vm545, %v683, 0
        %v734 = vsel %vm545, %v684, 0
        %v737 = vsel %vm545, %v685, 0
        %v740 = vsel %vm545, %v686, 0
        %v743 = vsel %vm545, %v687, 0
        %v746 = vsel %vm545, %v688, 0
        %v749 = vsel %vm545, %v689, 0
        %v752 = vsel %vm545, %v690, 0
        %754 = vmatprep.subr.bf16.mxu0 0
        %755 = vmatpush1.bf16.msra.mxu0 %v722
        %756 = vmatprep.subr.bf16.mxu0 0
        %757 = vmatpush1.bf16.msra.mxu0 %v723
        %758 = vmatprep.subr.bf16.mxu0 0
        %759 = vmatpush1.bf16.msra.mxu0 %v724
        %760 = vmatprep.subr.bf16.mxu0 0
        %761 = vmatpush1.bf16.msra.mxu0 %v725
        %762 = vmatprep.subr.bf16.mxu0 0
        %763 = vmatpush1.bf16.msra.mxu0 0
        %764 = vmatprep.subr.bf16.mxu0 0
        %765 = vmatpush1.bf16.msra.mxu0 0
        %766 = vmatprep.subr.bf16.mxu0 0
        %767 = vmatpush1.bf16.msra.mxu0 0
        %768 = vmatprep.subr.bf16.mxu0 0
        %769 = vmatpush1.bf16.msra.mxu0 0
        %770 = vmatprep.subr.bf16.mxu0 0
        %771 = vmatpush1.bf16.msra.mxu0 0
        %772 = vmatprep.subr.bf16.mxu0 0
        %773 = vmatpush1.bf16.msra.mxu0 0
        %774 = vmatprep.subr.bf16.mxu0 0
        %775 = vmatpush1.bf16.msra.mxu0 0
        %776 = vmatprep.subr.bf16.mxu0 0
        %777 = vmatpush1.bf16.msra.mxu0 0
        %778 = vmatprep.subr.bf16.mxu0 0
        %779 = vmatpush1.bf16.msra.mxu0 0
        %780 = vmatprep.subr.bf16.mxu0 0
        %781 = vmatpush1.bf16.msra.mxu0 0
        %782 = vmatprep.subr.bf16.mxu0 0
        %783 = vmatpush1.bf16.msra.mxu0 0
        %784 = vmatprep.subr.bf16.mxu0 0
        %785 = vmatpush1.bf16.msra.mxu0 0
        %786 = vmatprep.mubr.bf16.mxu0 0
        %787 = vmatmul.mubr.bf16.gmra.mrb[0].mxu0 %v731
        %v788 = vpop.f32.mrb[0].mxu0
        %v789 = vadd.f32 %v704, %v788
        %v790 = vpop.f32.mrb[0].mxu0
        %v791 = vpop.f32.mrb[0].mxu0
        %v792 = vadd.f32 %v704, %v791
        %v793 = vpop.f32.mrb[0].mxu0
        %794 = vmatprep.mubr.bf16.mxu0 0
        %795 = vmatmul.mubr.bf16.gmra.mrb[0].mxu0 %v734
        %v796 = vpop.f32.mrb[0].mxu0
        %v797 = vadd.f32 %v704, %v796
        %v798 = vpop.f32.mrb[0].mxu0
        %v799 = vpop.f32.mrb[0].mxu0
        %v800 = vadd.f32 %v704, %v799
        %v801 = vpop.f32.mrb[0].mxu0
        %802 = vmatprep.mubr.bf16.mxu0 0
        %803 = vmatmul.mubr.bf16.gmra.mrb[0].mxu0 %v737
        %v804 = vpop.f32.mrb[0].mxu0
        %v805 = vadd.f32 %v704, %v804
        %v806 = vpop.f32.mrb[0].mxu0
        %v807 = vpop.f32.mrb[0].mxu0
        %v808 = vadd.f32 %v704, %v807
        %v809 = vpop.f32.mrb[0].mxu0
        %810 = vmatprep.mubr.bf16.mxu0 0
        %811 = vmatmul.mubr.bf16.gmra.mrb[0].mxu0 %v740
        %v812 = vpop.f32.mrb[0].mxu0
        %v813 = vadd.f32 %v704, %v812
        %v814 = vpop.f32.mrb[0].mxu0
        %v815 = vpop.f32.mrb[0].mxu0
        %v816 = vadd.f32 %v704, %v815
        %v817 = vpop.f32.mrb[0].mxu0
        %818 = vmatprep.mubr.bf16.mxu0 0
        %819 = vmatmul.mubr.bf16.gmra.mrb[0].mxu0 %v743
        %v820 = vpop.f32.mrb[0].mxu0
        %v821 = vadd.f32 %v704, %v820
        %v822 = vpop.f32.mrb[0].mxu0
        %v823 = vpop.f32.mrb[0].mxu0
        %v824 = vadd.f32 %v704, %v823
        %v825 = vpop.f32.mrb[0].mxu0
        %826 = vmatprep.mubr.bf16.mxu0 0
        %827 = vmatmul.mubr.bf16.gmra.mrb[0].mxu0 %v746
        %v828 = vpop.f32.mrb[0].mxu0
        %v829 = vadd.f32 %v704, %v828
        %v830 = vpop.f32.mrb[0].mxu0
        %v831 = vpop.f32.mrb[0].mxu0
        %v832 = vadd.f32 %v704, %v831
        %v833 = vpop.f32.mrb[0].mxu0
        %834 = vmatprep.mubr.bf16.mxu0 0
        %835 = vmatmul.mubr.bf16.gmra.mrb[0].mxu0 %v749
        %v836 = vpop.f32.mrb[0].mxu0
        %v837 = vadd.f32 %v704, %v836
        %v838 = vpop.f32.mrb[0].mxu0
        %v839 = vpop.f32.mrb[0].mxu0
        %v840 = vadd.f32 %v704, %v839
        %v841 = vpop.f32.mrb[0].mxu0
        %842 = vmatprep.mubr.bf16.mxu0 0
        %843 = vmatmul.mubr.bf16.gmra.mrb[0].mxu0 %v752
        %v844 = vpop.f32.mrb[0].mxu0
        %v845 = vadd.f32 %v704, %v844
        %v846 = vpop.f32.mrb[0].mxu0
        %v847 = vpop.f32.mrb[0].mxu0
        %v848 = vadd.f32 %v704, %v847
        %v849 = vpop.f32.mrb[0].mxu0
        %850 = vdwg.mxu0
        %851 = vst [vmem:[%s272] sm:$0xff] %v789
        %852 = vst [vmem:[%s272 + $0x8] sm:$0xff] %v792
        %853 = vst [vmem:[%s272 + $0x10] sm:$0xff] %v797
        %854 = vst [vmem:[%s272 + $0x18] sm:$0xff] %v800
        %855 = vst [vmem:[%s272 + $0x20] sm:$0xff] %v805
        %856 = vst [vmem:[%s272 + $0x28] sm:$0xff] %v808
        %857 = vst [vmem:[%s272 + $0x30] sm:$0xff] %v813
        %858 = vst [vmem:[%s272 + $0x38] sm:$0xff] %v816
        %859 = vst [vmem:[%s272 + $0x40] sm:$0xff] %v821
        %860 = vst [vmem:[%s272 + $0x48] sm:$0xff] %v824
        %861 = vst [vmem:[%s272 + $0x50] sm:$0xff] %v829
        %862 = vst [vmem:[%s272 + $0x58] sm:$0xff] %v832
        %863 = vst [vmem:[%s272 + $0x60] sm:$0xff] %v837
        %864 = vst [vmem:[%s272 + $0x68] sm:$0xff] %v840
        %865 = vst [vmem:[%s272 + $0x70] sm:$0xff] %v845
        %866 = vst [vmem:[%s272 + $0x78] sm:$0xff] %v848
        %s867 = sand.u32 %s181, 1
        %s868 = scalar_lea.sflag [#allocation3], %s867
        %s869 = sand.u32 %s181, 1
        %s870 = smul.addr %s869, 128
        %s871 = scalar_lea.vmem [#allocation2], %s870
        // Predicated region
        $region49: #{tpu_custom_call.1} parent=47 // pred_check
          %p872 = pneg %p191
        $region50: #{tpu_custom_call.1} parent=47 // pred_check_branch
          %874 = sbr.rel (%p872) target = $region52
        $region51: #{tpu_custom_call.1} parent=47 // pred_region
          %s875 = smul.u32 16, %s21
          %s877 = ssub.s32 2048, 2048
          %878 = vsyncadd %s868, %s877
          %s879 = smul.addr %s875, 128
          %s880 = scalar_lea.hbm %s7, %s879
          %s881 = sshll.u32 %s871, 4
          %s882 = int_to_ptr.vmem [resolvable:$true] %s881
          %887 = dma.vmem_to_hbm [thread:$0]  %s882, 2048, %s880, %s868, 128, 128, 8
        $region52: #{tpu_custom_call.1} parent=47 // pred_fallthru
          _
      $region48: #{tpu_custom_call.1} parent=5 // pred_fallthru
        _
      %p888 = scmp.le.s32.totalorder 2, %s16
      // Predicated region
      $region53: #{tpu_custom_call.1} parent=5 // pred_check
        %p889 = pneg %p888
      $region54: #{tpu_custom_call.1} parent=5 // pred_check_branch
        %891 = sbr.rel (%p889) target = $region56
      $region55: #{tpu_custom_call.1} parent=5 // pred_region
        %s892 = ssub.s32 %s16, 2
        // Predicated region
        $region57: #{tpu_custom_call.1} parent=55 // pred_check
          %p893 = pneg %p197
        $region58: #{tpu_custom_call.1} parent=55 // pred_check_branch
          %895 = sbr.rel (%p893) target = $region60
        $region59: #{tpu_custom_call.1} parent=55 // pred_region
          %s896 = sand.u32 %s182, 1
          %s897 = scalar_lea.sflag [#allocation3], %s896
          %s898 = sand.u32 %s182, 1
          %s899 = smul.addr %s898, 128
          %s900 = scalar_lea.vmem [#allocation2], %s899
          %901 = dma.done %s897, 2048
        $region60: #{tpu_custom_call.1} parent=55 // pred_fallthru
          _
      $region56: #{tpu_custom_call.1} parent=5 // pred_fallthru
        _
    $region6: #{tpu_custom_call.1} parent=1 // loop_footer
      %s20 = sadd.s32 1, %s16
    $region7: #{tpu_custom_call.1} parent=1 // loop_footer_branch
      %15 = sbr.rel target = $region3
    $region8: #{tpu_custom_call.1} parent=1 // loop_exit
      _
    %902 = vsyncpa [#allocation3], 1
    %s903 = scalar_lea.sflag [#allocation3], 1
    %904 = vsyncpa %s903, 1

</llo_original>
